<compile_context>
chip_gen: v7x
topology: tpu7x:2x2x1
jax: 0.10.0
libtpu: 0.0.40
codegen_flags: <defaults>
</compile_context>

<pallas_src>
import functools

import jax
import jax.numpy as jnp
from jax.experimental import pallas as pl
from jax.experimental.pallas import tpu as pltpu

IN_CHANS_X = 3          # stage0[0] input channels (RGB image)
EMBED_DIM0 = 32         # segformer 'mit_b0' embed_dims[0] -> MDEQ channel width
NUM_LAYERS = 4          # cfg['MODEL']['NUM_LAYERS'] (stacked / pretrain path)
MAX_TOKEN_TILE = 32768  # upper bound on tokens (lanes) per grid step
MIN_GRID_STEPS = 4      # give v7x megacore (2 TCs) at least 2 steps per core
STACKED_CHUNK = 512     # in-kernel token sub-tile so z/c stay in vregs (stacked path)


def _round_up(v, m):
    return -(-v // m) * m


def _vmem_capacity_bytes():
    """Physical VMEM per core; conservative (v7x-sized) fallback if the query fails."""
    try:
        cap = int(pltpu.get_tpu_info().vmem_capacity_bytes)
        if cap > 0:
            return cap
    except Exception:
        pass
    return 64 << 20


def _choose_token_tile(hw, batch, out_itemsize):
    """Pick token tile TM (multiple of 128), block count, and padded row length.

    VMEM-aware: 2x-buffered f32 input (3 ch) + 3x-buffered output (32 ch) per token
    must fit inside ~40% of physical VMEM (rest is intermediates / headroom).
    Also guarantees >= MIN_GRID_STEPS total grid steps when the data allows it.
    """
    vmem = _vmem_capacity_bytes()
    buffer_budget = int(vmem * 0.4)
    per_token = 2 * IN_CHANS_X * 4 + 3 * EMBED_DIM0 * out_itemsize
    cap = max(128, min(MAX_TOKEN_TILE, (buffer_budget // per_token) // 128 * 128))

    # Minimize padding: pick block count first, then the smallest 128-multiple tile.
    n_blk = max(1, -(-hw // cap))
    tm = min(cap, _round_up(-(-hw // n_blk), 128))
    n_blk = -(-hw // tm)

    # Megacore: shrink the tile until (B, n_blk) has enough total steps.
    while batch * n_blk < MIN_GRID_STEPS and tm > 128:
        tm -= 128
        n_blk = -(-hw // tm)

    return tm, n_blk, n_blk * tm


def _pick_chunk(tm):
    for c in (STACKED_CHUNK, 256, 128):
        if tm % c == 0:
            return c
    return tm  # tm is always a multiple of 128, so this is unreachable


def _folded_kernel(x_ref, w_ref, b_ref, o_ref):
    """out = W_eff @ x + b_eff  (the whole stacked iteration folded into one matmul).

    x_ref: (1, 3, TM)   image tokens, channels on sublanes / tokens on lanes
    w_ref: (32, 3)      S^T @ Wx        (VMEM resident)
    b_ref: (32, 1)      S^T @ (bx+bz)   (VMEM resident)
    o_ref: (1, 32, TM)  output tokens (lane-dense stores)
    """
    x = x_ref[0].astype(jnp.float32)                       # (3, TM)
    w = w_ref[...].astype(jnp.float32)                     # (32, 3)
    b = b_ref[...].astype(jnp.float32)                     # (32, 1)
    y = jnp.dot(w, x, preferred_element_type=jnp.float32) + b
    o_ref[0] = y.astype(o_ref.dtype)


def _stacked_kernel(x_ref, wx_ref, bx_ref, wz_ref, bz_ref, o_ref, *, num_layers, chunk):
    """Explicit weight-tied loop, chunked along tokens so z/c stay in vregs.

    x_ref : (1, 3, TM)   wx_ref: (32, 3)   bx_ref: (32, 1)
    wz_ref: (32, 32)     bz_ref: (32, 1)   o_ref : (1, 32, TM)
    """
    wx = wx_ref[...].astype(jnp.float32)
    wz = wz_ref[...].astype(jnp.float32)
    b = (bx_ref[...] + bz_ref[...]).astype(jnp.float32)     # (32, 1)
    tm = o_ref.shape[-1]
    n_chunks = tm // chunk

    @pl.loop(0, n_chunks)
    def _(i):
        start = pl.multiple_of(i * chunk, chunk)
        x = x_ref[0, :, pl.ds(start, chunk)].astype(jnp.float32)        # (3, chunk)
        # Loop-invariant term c = Wx x + bx + bz; z_0 = 0 => z_1 = c exactly
        # (dead matmul against zeros is skipped).
        c = jnp.dot(wx, x, preferred_element_type=jnp.float32) + b      # (32, chunk)
        z = c
        for _ in range(num_layers - 1):
            # TODO(synk): segformer mit_b0 backbone lives in an external
            # models.segformer file (source not provided); treated as identity here.
            z = jnp.dot(wz, z, preferred_element_type=jnp.float32) + c
        o_ref[0, :, pl.ds(start, chunk)] = z.astype(o_ref.dtype)


def init_params(key):
    """Deterministic synthetic parameters matching the module's __init__ shapes."""
    k0, k1, k2, k3 = jax.random.split(key, 4)
    # PyTorch shapes: stage0[0].weight (32,3,1,1), stage0[1].weight (32,32,1,1)
    w_x = jax.random.normal(k0, (EMBED_DIM0, IN_CHANS_X, 1, 1), jnp.float32) * 0.2
    b_x = jax.random.normal(k1, (EMBED_DIM0,), jnp.float32) * 0.1
    w_z = jax.random.normal(k2, (EMBED_DIM0, EMBED_DIM0, 1, 1), jnp.float32) * 0.1
    b_z = jax.random.normal(k3, (EMBED_DIM0,), jnp.float32) * 0.1
    return {"w_x": w_x, "b_x": b_x, "w_z": w_z, "b_z": b_z}


def mdeq_segformer_net_forward(x_nchw, params, num_layers=NUM_LAYERS,
                               fold_linear=True, out_dtype=None):
    """Equivalent of MDEQ_SegformerNet._forward (eval mode, stacked path).

    Returns (y, jac_loss, sradius) with the PyTorch shapes:
      y: (B, 32, H, W), jac_loss: (1, 1), sradius: (B, 1).
    out_dtype=jnp.bfloat16 halves the dominant HBM write traffic (semantics change
    for the caller; default keeps the input dtype).
    """
    B, C_in, H, W = x_nchw.shape
    assert C_in == IN_CHANS_X
    assert num_layers >= 1
    out_dtype = jnp.dtype(x_nchw.dtype if out_dtype is None else out_dtype)

    hw = H * W
    tm, n_blk, hw_pad = _choose_token_tile(hw, B, out_dtype.itemsize)

    # Pure view (NCHW already has channels on sublanes / tokens on lanes); pad the
    # token axis so the grid divides evenly (padded tokens are sliced off below).
    x3 = x_nchw.reshape(B, C_in, hw)
    if hw_pad != hw:
        x3 = jnp.pad(x3, ((0, 0), (0, 0), (0, hw_pad - hw)))

    # Conv2d 1x1 weights in "column" orientation (out_ch, in_ch).
    wx = params["w_x"][:, :, 0, 0].astype(jnp.float32)          # (32, 3)
    wz = params["w_z"][:, :, 0, 0].astype(jnp.float32)          # (32, 32)
    bx = params["b_x"].reshape(EMBED_DIM0, 1).astype(jnp.float32)
    bz = params["b_z"].reshape(EMBED_DIM0, 1).astype(jnp.float32)

    x_spec = pl.BlockSpec((1, C_in, tm), lambda b, t: (b, 0, t))
    # Tiny grid-invariant constants: whole-array VMEM residents (not pipelined).
    weight_spec = pl.BlockSpec(memory_space=pltpu.MemorySpace.VMEM)
    out_shape = jax.ShapeDtypeStruct((B, EMBED_DIM0, hw_pad), out_dtype)

    vmem_cap = _vmem_capacity_bytes()
    cparams = pltpu.CompilerParams(
        dimension_semantics=("parallel", "parallel"),
        vmem_limit_bytes=min(int(vmem_cap * 0.75), 100 << 20))

    in_bytes = B * C_in * hw_pad * x3.dtype.itemsize
    out_bytes = B * EMBED_DIM0 * hw_pad * out_dtype.itemsize
    flops = 2 * B * hw_pad * EMBED_DIM0 * IN_CHANS_X
    if not fold_linear:
        flops += 2 * B * hw_pad * EMBED_DIM0 * EMBED_DIM0 * max(0, num_layers - 1)
    cost = pl.CostEstimate(flops=flops, transcendentals=0,
                           bytes_accessed=in_bytes + out_bytes)

    if fold_linear:
        # Exact fold of the weight-tied stacked iteration (valid only while the
        # segformer backbone is identity -- see TODO in _stacked_kernel):
        #   z_L = S^T @ (Wx x + bx + bz),  S^T = I + Wz + Wz^2 + ... + Wz^{L-1}
        st = jnp.eye(EMBED_DIM0, dtype=jnp.float32)
        p = jnp.eye(EMBED_DIM0, dtype=jnp.float32)
        for _ in range(num_layers - 1):
            p = p @ wz
            st = st + p
        kernel = _folded_kernel
        in_specs = [x_spec, weight_spec, weight_spec]
        args = (x3, st @ wx, st @ (bx + bz))
    else:
        kernel = functools.partial(_stacked_kernel, num_layers=num_layers,
                                   chunk=_pick_chunk(tm))
        in_specs = [x_spec, weight_spec, weight_spec, weight_spec, weight_spec]
        args = (x3, wx, bx, wz, bz)

    def run(output_buffers):
        if output_buffers is None:
            o_spec = pl.BlockSpec((1, EMBED_DIM0, tm), lambda b, t: (b, 0, t))
        else:
            # Deeper output pipeline: writeback of tile i never serializes against
            # the input fetch of tile i+1 (the op is HBM-write bound).
            o_spec = pl.BlockSpec((1, EMBED_DIM0, tm), lambda b, t: (b, 0, t),
                                  pipeline_mode=pl.Buffered(output_buffers))
        return pl.pallas_call(
            kernel,
            out_shape=out_shape,
            grid_spec=pltpu.PrefetchScalarGridSpec(
                num_scalar_prefetch=0,
                grid=(B, n_blk),
                in_specs=in_specs,
                out_specs=o_spec),
            compiler_params=cparams,
            cost_estimate=cost,
        )(*args)

    try:
        y3 = run(3)
        y3 = jax.block_until_ready(y3)
    except Exception:
        # Installed jax/Mosaic rejects pipeline_mode on this spec: fall back to the
        # default double-buffered output pipeline.
        y3 = run(None)

    if hw_pad != hw:
        y3 = y3[:, :, :hw]
    y = y3.reshape(B, EMBED_DIM0, H, W)   # restore_shape: pure view back to NCHW

    # iodrop has p=0.0 -> identity.  Eval mode: jac_loss = 0, sradius = zeros(B,1).
    # TODO(synk): DEQ f_solver/b_solver (broyden/anderson via eval(cfg)), jac_loss
    # estimation and power_method are external; the module's own pretrain "stacked"
    # path (explicit num_layers iterations) is what is implemented here.
    jac_loss = jnp.zeros((1, 1), x_nchw.dtype)
    sradius = jnp.zeros((B, 1), x_nchw.dtype)
    return y, jac_loss, sradius


def _reference_forward(x_nchw, params, num_layers=NUM_LAYERS):
    """Pure-JAX reference of the same computation (loop form, token-row layout)."""
    B, _, H, W = x_nchw.shape
    x_tok = jnp.transpose(x_nchw, (0, 2, 3, 1)).reshape(-1, IN_CHANS_X).astype(jnp.float32)
    wx = params["w_x"][:, :, 0, 0].T               # (3, 32)
    wz = params["w_z"][:, :, 0, 0].T               # (32, 32)
    u = x_tok @ wx + params["b_x"][None, :]
    z = jnp.zeros((x_tok.shape[0], EMBED_DIM0), jnp.float32)
    for _ in range(num_layers):
        z = z @ wz + params["b_z"][None, :] + u
    return jnp.transpose(z.reshape(B, H, W, EMBED_DIM0), (0, 3, 1, 2))


if __name__ == "__main__":
    key = jax.random.PRNGKey(0)
    k_x, k_p, k_x2 = jax.random.split(key, 3)
    params = init_params(k_p)

    # Case 1: 128-divisible token count (exercises the multi-step parallel grid).
    B, H, W = 2, 16, 16
    x = jax.random.normal(k_x, (B, IN_CHANS_X, H, W), jnp.float32)
    y_ref = _reference_forward(x, params, NUM_LAYERS)

    y, jac_loss, sradius = mdeq_segformer_net_forward(x, params, NUM_LAYERS, fold_linear=True)
    y = jax.block_until_ready(y)
    assert y.shape == (B, EMBED_DIM0, H, W)
    assert jac_loss.shape == (1, 1) and sradius.shape == (B, 1)
    assert jnp.allclose(y, y_ref, atol=1e-4, rtol=1e-4), "folded kernel mismatch"

    y2, _, _ = mdeq_segformer_net_forward(x, params, NUM_LAYERS, fold_linear=False)
    y2 = jax.block_until_ready(y2)
    assert jnp.allclose(y2, y_ref, atol=1e-4, rtol=1e-4), "stacked kernel mismatch"

    # Case 2: token count NOT a multiple of 128 (exercises the padding path).
    Hp, Wp = 10, 10
    xp = jax.random.normal(k_x2, (B, IN_CHANS_X, Hp, Wp), jnp.float32)
    yp_ref = _reference_forward(xp, params, NUM_LAYERS)
    yp, _, _ = mdeq_segformer_net_forward(xp, params, NUM_LAYERS, fold_linear=True)
    yp = jax.block_until_ready(yp)
    assert yp.shape == (B, EMBED_DIM0, Hp, Wp)
    assert jnp.allclose(yp, yp_ref, atol=1e-4, rtol=1e-4), "padded-path mismatch"

    # Case 3: optional bf16 output (halves the dominant HBM write traffic).
    yb, _, _ = mdeq_segformer_net_forward(x, params, NUM_LAYERS, fold_linear=True,
                                          out_dtype=jnp.bfloat16)
    yb = jax.block_until_ready(yb)
    assert yb.dtype == jnp.bfloat16
    assert jnp.allclose(yb.astype(jnp.float32), y_ref, atol=5e-2, rtol=5e-2), "bf16 mismatch"

    print("KERNEL_OK")
</pallas_src>

<mosaic_0001>
module attributes {stable_mosaic.version = 11 : i64} {
  func.func @_folded_kernel(%arg0: i32, %arg1: i32, %arg2: memref<1x3x128xf32, #tpu.memory_space<vmem>>, %arg3: memref<32x3xf32, #tpu.memory_space<vmem>>, %arg4: memref<32x1xf32, #tpu.memory_space<vmem>>, %arg5: memref<1x32x128xf32, #tpu.memory_space<vmem>>) attributes {dimension_semantics = [#tpu.dimension_semantics<parallel>, #tpu.dimension_semantics<parallel>], iteration_bounds = array<i64: 2, 2>, scalar_prefetch = 0 : i64, scratch_operands = 0 : i64, tpu.core_type = #tpu.core_type<tc>, window_params = [{transform_indices = @transform_0, window_bounds = array<i64: 1, 3, 128>}, {pipeline_mode = #tpu.pipeline_mode<synchronous>, transform_indices = @transform_1, window_bounds = array<i64: 32, 3>}, {pipeline_mode = #tpu.pipeline_mode<synchronous>, transform_indices = @transform_2, window_bounds = array<i64: 32, 1>}, {transform_indices = @transform_3, window_bounds = array<i64: 1, 32, 128>}]} {
    %c0 = arith.constant 0 : index
    %c0_0 = arith.constant 0 : index
    %c0_1 = arith.constant 0 : index
    %0 = vector.load %arg2[%c0, %c0_0, %c0_1] : memref<1x3x128xf32, #tpu.memory_space<vmem>>, vector<1x3x128xf32>
    %1 = vector.shape_cast %0 : vector<1x3x128xf32> to vector<3x128xf32>
    %c0_2 = arith.constant 0 : index
    %c0_3 = arith.constant 0 : index
    %2 = vector.load %arg3[%c0_2, %c0_3] : memref<32x3xf32, #tpu.memory_space<vmem>>, vector<32x3xf32>
    %c0_4 = arith.constant 0 : index
    %c0_5 = arith.constant 0 : index
    %3 = vector.load %arg4[%c0_4, %c0_5] : memref<32x1xf32, #tpu.memory_space<vmem>>, vector<32x1xf32>
    %cst = arith.constant dense<0.000000e+00> : vector<32x128xf32>
    %4 = tpu.matmul %2, %1, %cst {dimension_numbers = #tpu.dot_dimension_numbers<[1], [0], [0], [1], [0, 0, 1, 1], [], []>} : vector<32x3xf32>, vector<3x128xf32>, vector<32x128xf32> -> vector<32x128xf32>
    %5 = vector.broadcast %3 : vector<32x1xf32> to vector<32x128xf32>
    %6 = arith.addf %4, %5 : vector<32x128xf32>
    %c0_6 = arith.constant 0 : index
    %c0_7 = arith.constant 0 : index
    %c0_8 = arith.constant 0 : index
    %7 = vector.load %arg5[%c0_6, %c0_7, %c0_8] : memref<1x32x128xf32, #tpu.memory_space<vmem>>, vector<1x32x128xf32>
    %8 = vector.shape_cast %7 : vector<1x32x128xf32> to vector<32x128xf32>
    %9 = vector.shape_cast %6 : vector<32x128xf32> to vector<1x32x128xf32>
    tpu.vector_store %arg5[%c0_6, %c0_7, %c0_8], %9 {strides = array<i32>} : memref<1x32x128xf32, #tpu.memory_space<vmem>>, vector<1x32x128xf32>,
    return
  }
  func.func @transform_0(%arg0: i32, %arg1: i32) -> (i32, i32, i32) {
    %c0_i32 = arith.constant 0 : i32
    %c0_i32_0 = arith.constant 0 : i32
    return %arg0, %c0_i32, %arg1 : i32, i32, i32
  }
  func.func @transform_1(%arg0: i32, %arg1: i32) -> (i32, i32) {
    %c0_i32 = arith.constant 0 : i32
    %c0_i32_0 = arith.constant 0 : i32
    %c0_i32_1 = arith.constant 0 : i32
    return %c0_i32, %c0_i32_0 : i32, i32
  }
  func.func @transform_2(%arg0: i32, %arg1: i32) -> (i32, i32) {
    %c0_i32 = arith.constant 0 : i32
    %c0_i32_0 = arith.constant 0 : i32
    %c0_i32_1 = arith.constant 0 : i32
    return %c0_i32, %c0_i32_0 : i32, i32
  }
  func.func @transform_3(%arg0: i32, %arg1: i32) -> (i32, i32, i32) {
    %c0_i32 = arith.constant 0 : i32
    %c0_i32_0 = arith.constant 0 : i32
    return %arg0, %c0_i32, %arg1 : i32, i32, i32
  }
}

</mosaic_0001>

<llo_original>
// kernel: tpu_custom_call.1
$region0: #{tpu_custom_call.1}
  #allocation0 [shape = 'u32[]', space=smem, size = 0x4, offset = 0x4, fixed_abs, tag = 'smem constant byte address 0x4 - core index']
  #allocation1 [shape = 'u32[144,128]{1,0:T(1,128)}', space=vmem, size = 0x12000, scoped, tag = 'internal scratch']
  %s0 = inlined_call_operand.vmem [shape: f32[2,3,256], index: 0, kind: input, shape index: {}]
  %s1 = inlined_call_operand.vmem [shape: f32[32,3], index: 1, kind: input, shape index: {}]
  %s2 = inlined_call_operand.vmem [shape: f32[32,1], index: 2, kind: input, shape index: {}]
  %s3 = inlined_call_operand.hbm [shape: f32[2,32,256], index: 3, kind: output, shape index: {}]
  %s4 = sld [smem:[#allocation0]]
  $region45: #{tpu_custom_call.1} parent=0
    _
  %s6 = ssub.s32 1, %s4
  %s7 = scalar_select 0, %s6, %s4
  $region1: #{tpu_custom_call.1} parent=0
    #allocation2 [shape = 'u8[32768]{0}', space=vmem, size = 0x8000, scoped, tag = 'output window, operand 0']
    #allocation3 [shape = 's32[2]{0}', space=sflag, size = 0x8, scoped, tag = 'scoped memory for tpu_custom_call.1']
    %8 = vsyncpa [#allocation3], 0
    %s9 = scalar_lea.sflag [#allocation3], 1
    %10 = vsyncpa %s9, 0
    loop: start=0, step=1, limit=6
    $region2: #{tpu_custom_call.1} parent=1 // loop_pre_header
      _
    $region3: #{tpu_custom_call.1} parent=1 // loop_header
      %s12 = sphi 0, %s16
      %p13 = scmp.ge.s32.totalorder %s12, 6
      %s19 = sphi 0, %s31
      %s20 = sphi 0, %s27
      %s21 = sphi 0, %s19
      %s22 = sphi 0, %s20
      %s23 = sphi 0, %s21
      %s24 = sphi 0, %s22
      %s36 = sphi 0, %s38
      %s39 = sphi 0, %s36
      %s40 = sphi 0, %s39
      %s56 = sphi 0, %s40
      %s60 = sphi 0, %s60
      %s62 = sphi 0, %s60
      %s63 = sphi 0, %s62
      %s77 = sphi 0, %s63
      %s81 = sphi 0, %s81
      %s83 = sphi 0, %s81
      %s84 = sphi 0, %s83
      %s98 = sphi 0, %s84
      %s106 = sphi 0, %s108
      %s109 = sphi 0, %s106
      %s110 = sphi 0, %s109
      %s126 = sphi 0, %s110
    $region4: #{tpu_custom_call.1} parent=1 // loop_header_branch
      %15 = sbr.rel (%p13) target = $region8
    $region5: #{tpu_custom_call.1} parent=1 // loop_body
      %s17 = ssub.s32 %s12, 1
      %s18 = ssub.s32 %s12, 2
      %s25 = sadd.s32 1, %s20
      %p26 = scmp.ge.s32.totalorder %s25, 2
      %s27 = scalar_select %p26, 0, %s25
      %s28 = sadd.s32 1, %s19
      %s29 = scalar_select %p26, %s28, %s19
      %p30 = scmp.ge.s32.totalorder %s29, 2
      %s31 = scalar_select %p30, 0, %s29
      %s32 = ssub.s32 %s19, %s31
      %s33 = ssub.s32 %s20, %s27
      %s34 = sor.u32 %s32, %s33
      %p35 = scmp.eq.s32.totalorder %s34, 0
      %s37 = sadd.s32 %s36, 1
      %s38 = scalar_select %p35, %s36, %s37
      %p41 = pneg %p35
      %p42 = scmp.eq.s32.totalorder %s12, 3
      %p43 = por %p41, %p42
      %p44 = scmp.ne.s32.totalorder %s36, %s39
      %p45 = scmp.eq.s32.totalorder %s12, 0
      %p46 = por %p44, %p45
      %p47 = scmp.ne.s32.totalorder %s36, %s39
      %p48 = scmp.eq.s32.totalorder %s17, 3
      %p49 = por %p47, %p48
      %p50 = scmp.ne.s32.totalorder %s39, %s40
      %p51 = scmp.eq.s32.totalorder %s17, 0
      %p52 = por %p50, %p51
      %p53 = scmp.ne.s32.totalorder %s39, %s40
      %p54 = scmp.eq.s32.totalorder %s18, 3
      %p55 = por %p53, %p54
      %p57 = scmp.ne.s32.totalorder %s40, %s56
      %p58 = scmp.eq.s32.totalorder %s18, 0
      %p59 = por %p57, %p58
      %s61 = sadd.s32 %s60, 1
      %p64 = scmp.eq.s32.totalorder %s12, 3
      %p65 = scmp.ne.s32.totalorder %s60, %s62
      %p66 = scmp.eq.s32.totalorder %s12, 0
      %p67 = por %p65, %p66
      %p68 = scmp.ne.s32.totalorder %s60, %s62
      %p69 = scmp.eq.s32.totalorder %s17, 3
      %p70 = por %p68, %p69
      %p71 = scmp.ne.s32.totalorder %s62, %s63
      %p72 = scmp.eq.s32.totalorder %s17, 0
      %p73 = por %p71, %p72
      %p74 = scmp.ne.s32.totalorder %s62, %s63
      %p75 = scmp.eq.s32.totalorder %s18, 3
      %p76 = por %p74, %p75
      %p78 = scmp.ne.s32.totalorder %s63, %s77
      %p79 = scmp.eq.s32.totalorder %s18, 0
      %p80 = por %p78, %p79
      %s82 = sadd.s32 %s81, 1
      %p85 = scmp.eq.s32.totalorder %s12, 3
      %p86 = scmp.ne.s32.totalorder %s81, %s83
      %p87 = scmp.eq.s32.totalorder %s12, 0
      %p88 = por %p86, %p87
      %p89 = scmp.ne.s32.totalorder %s81, %s83
      %p90 = scmp.eq.s32.totalorder %s17, 3
      %p91 = por %p89, %p90
      %p92 = scmp.ne.s32.totalorder %s83, %s84
      %p93 = scmp.eq.s32.totalorder %s17, 0
      %p94 = por %p92, %p93
      %p95 = scmp.ne.s32.totalorder %s83, %s84
      %p96 = scmp.eq.s32.totalorder %s18, 3
      %p97 = por %p95, %p96
      %p99 = scmp.ne.s32.totalorder %s84, %s98
      %p100 = scmp.eq.s32.totalorder %s18, 0
      %p101 = por %p99, %p100
      %s102 = ssub.s32 %s19, %s31
      %s103 = ssub.s32 %s20, %s27
      %s104 = sor.u32 %s102, %s103
      %p105 = scmp.eq.s32.totalorder %s104, 0
      %s107 = sadd.s32 %s106, 1
      %s108 = scalar_select %p105, %s106, %s107
      %p111 = pneg %p105
      %p112 = scmp.eq.s32.totalorder %s12, 3
      %p113 = por %p111, %p112
      %p114 = scmp.ne.s32.totalorder %s106, %s109
      %p115 = scmp.eq.s32.totalorder %s12, 0
      %p116 = por %p114, %p115
      %p117 = scmp.ne.s32.totalorder %s106, %s109
      %p118 = scmp.eq.s32.totalorder %s17, 3
      %p119 = por %p117, %p118
      %p120 = scmp.ne.s32.totalorder %s109, %s110
      %p121 = scmp.eq.s32.totalorder %s17, 0
      %p122 = por %p120, %p121
      %p123 = scmp.ne.s32.totalorder %s109, %s110
      %p124 = scmp.eq.s32.totalorder %s18, 3
      %p125 = por %p123, %p124
      %p127 = scmp.ne.s32.totalorder %s110, %s126
      %p128 = scmp.eq.s32.totalorder %s18, 0
      %p129 = por %p127, %p128
      %p130 = scmp.le.s32.totalorder 1, %s12
      %p131 = scmp.lt.s32.totalorder %s12, 5
      %p132 = pnand %p130, %p131
      %p133 = pneg %p132
      // Predicated region
      $region9: #{tpu_custom_call.1} parent=5 // pred_check
        _
      $region10: #{tpu_custom_call.1} parent=5 // pred_check_branch
        %135 = sbr.rel (%p132) target = $region12
      $region11: #{tpu_custom_call.1} parent=5 // pred_region
        %s136 = ssub.s32 %s12, 1
        // Predicated region
        $region13: #{tpu_custom_call.1} parent=11 // pred_check
          %p137 = pneg %p73
        $region14: #{tpu_custom_call.1} parent=11 // pred_check_branch
          %139 = sbr.rel (%p137) target = $region16
        $region15: #{tpu_custom_call.1} parent=11 // pred_region
          _
        $region16: #{tpu_custom_call.1} parent=11 // pred_fallthru
          _
        // Predicated region
        $region17: #{tpu_custom_call.1} parent=11 // pred_check
          %p140 = pneg %p94
        $region18: #{tpu_custom_call.1} parent=11 // pred_check_branch
          %142 = sbr.rel (%p140) target = $region20
        $region19: #{tpu_custom_call.1} parent=11 // pred_region
          _
        $region20: #{tpu_custom_call.1} parent=11 // pred_fallthru
          _
      $region12: #{tpu_custom_call.1} parent=5 // pred_fallthru
        _
      %p143 = scmp.lt.s32.totalorder %s12, 4
      // Predicated region
      $region21: #{tpu_custom_call.1} parent=5 // pred_check
        %p144 = pneg %p143
      $region22: #{tpu_custom_call.1} parent=5 // pred_check_branch
        %146 = sbr.rel (%p144) target = $region24
      $region23: #{tpu_custom_call.1} parent=5 // pred_region
        // Predicated region
        $region25: #{tpu_custom_call.1} parent=23 // pred_check
          %p147 = pneg %p46
        $region26: #{tpu_custom_call.1} parent=23 // pred_check_branch
          %149 = sbr.rel (%p147) target = $region28
        $region27: #{tpu_custom_call.1} parent=23 // pred_region
          %p150 = scmp.lt.s32.totalorder %s19, 1
          %s151 = scalar_select %p150, %s19, 1
          %p152 = scmp.lt.s32.totalorder %s20, 1
          %s153 = scalar_select %p152, %s20, 1
          %s154 = smul.addr %s151, 2
          %s155 = sadd.s32 %s153, %s154
          %s156 = smul.addr %s155, 4
          %s157 = scalar_lea.vmem %s0, %s156
        $region28: #{tpu_custom_call.1} parent=23 // pred_fallthru
          _
      $region24: #{tpu_custom_call.1} parent=5 // pred_fallthru
        _
      %p158 = scmp.le.s32.totalorder 1, %s12
      %p159 = scmp.lt.s32.totalorder %s12, 5
      %p160 = pnand %p158, %p159
      %p161 = pneg %p160
      // Predicated region
      $region29: #{tpu_custom_call.1} parent=5 // pred_check
        _
      $region30: #{tpu_custom_call.1} parent=5 // pred_check_branch
        %163 = sbr.rel (%p160) target = $region32
      $region31: #{tpu_custom_call.1} parent=5 // pred_region
        %s164 = ssub.s32 %s12, 1
        %p165 = scmp.lt.s32.totalorder %s21, 1
        %s166 = scalar_select %p165, %s21, 1
        %p167 = scmp.lt.s32.totalorder %s22, 1
        %s168 = scalar_select %p167, %s22, 1
        %s169 = smul.addr %s166, 2
        %s170 = sadd.s32 %s168, %s169
        %s171 = smul.addr %s170, 4
        %s172 = scalar_lea.vmem %s0, %s171
        %p173 = pneg %p52
        %p174 = pneg %p49
        %p175 = pneg %p73
        %p176 = pneg %p70
        %p177 = pneg %p94
        %p178 = pneg %p91
        %p179 = pneg %p122
        %p180 = pneg %p119
        %s181 = sand.u32 %s109, 1
        %s182 = scalar_lea.sflag [#allocation3], %s181
        %s183 = sand.u32 %s109, 1
        %s184 = smul.addr %s183, 32
        %s185 = scalar_lea.vmem [#allocation2], %s184
        %p186 = scmp.lt.s32.totalorder %s21, 1
        %s187 = scalar_select %p186, %s21, 1
        %p188 = scmp.lt.s32.totalorder %s22, 1
        %s189 = scalar_select %p188, %s22, 1
        %s190 = smul.addr %s187, 2
        %s191 = sadd.s32 %s189, %s190
        %s192 = smul.addr %s191, 4
        %s193 = scalar_lea.vmem %s0, %s192
        %v194 = vld [vmem:[%s193] sm:$0x7]
        %v195 = vld [vmem:[%s1] sm:$0xff]
        %v196 = vld [vmem:[%s1 + $0x8] sm:$0xff]
        %v197 = vld [vmem:[%s1 + $0x10] sm:$0xff]
        %v198 = vld [vmem:[%s1 + $0x18] sm:$0xff]
        %v199 = vld [vmem:[%s2] sm:$0xff]
        %v200 = vld [vmem:[%s2 + $0x8] sm:$0xff]
        %v201 = vld [vmem:[%s2 + $0x10] sm:$0xff]
        %v202 = vld [vmem:[%s2 + $0x18] sm:$0xff]
        %204 = vset.pattern.permute.xlu0 0
        %205 = vperm.xlu0 %204, %v199
        %v206 = vpop.permute.xlu0 %205
        %209 = vset.pattern.permute.xlu0 0
        %210 = vperm.xlu0 %209, %v200
        %v211 = vpop.permute.xlu0 %210
        %214 = vset.pattern.permute.xlu0 0
        %215 = vperm.xlu0 %214, %v201
        %v216 = vpop.permute.xlu0 %215
        %219 = vset.pattern.permute.xlu0 0
        %220 = vperm.xlu0 %219, %v202
        %v221 = vpop.permute.xlu0 %220
        %vm223 = vcmask 23552
        %v225 = vsel %vm223, %v195, 0
        %v228 = vsel %vm223, %v196, 0
        %v231 = vsel %vm223, %v197, 0
        %v234 = vsel %vm223, %v198, 0
        %vm236 = vcmask 1042432
        %v238 = vsel %vm236, %v194, 0
        %240 = vmatprep.subr.mxu0 0.0
        %241 = vmatpush1.msra.mxu0 %v238
        %242 = vmatprep.subr.mxu0 0.0
        %243 = vmatpush1.msra.mxu0 0.0
        %244 = vmatprep.subr.mxu0 0.0
        %245 = vmatpush1.msra.mxu0 0.0
        %246 = vmatprep.subr.mxu0 0.0
        %247 = vmatpush1.msra.mxu0 0.0
        %248 = vmatprep.subr.mxu0 0.0
        %249 = vmatpush1.msra.mxu0 0.0
        %250 = vmatprep.subr.mxu0 0.0
        %251 = vmatpush1.msra.mxu0 0.0
        %252 = vmatprep.subr.mxu0 0.0
        %253 = vmatpush1.msra.mxu0 0.0
        %254 = vmatprep.subr.mxu0 0.0
        %255 = vmatpush1.msra.mxu0 0.0
        %256 = vmatprep.subr.mxu0 0.0
        %257 = vmatpush1.msra.mxu0 0.0
        %258 = vmatprep.subr.mxu0 0.0
        %259 = vmatpush1.msra.mxu0 0.0
        %260 = vmatprep.subr.mxu0 0.0
        %261 = vmatpush1.msra.mxu0 0.0
        %262 = vmatprep.subr.mxu0 0.0
        %263 = vmatpush1.msra.mxu0 0.0
        %264 = vmatprep.subr.mxu0 0.0
        %265 = vmatpush1.msra.mxu0 0.0
        %266 = vmatprep.subr.mxu0 0.0
        %267 = vmatpush1.msra.mxu0 0.0
        %268 = vmatprep.subr.mxu0 0.0
        %269 = vmatpush1.msra.mxu0 0.0
        %270 = vmatprep.subr.mxu0 0.0
        %271 = vmatpush1.msra.mxu0 0.0
        %272 = vmatprep.subr.mxu0 0.0
        %273 = vmatpush1.msra.mxu0 0.0
        %274 = vmatprep.subr.mxu0 0.0
        %275 = vmatpush1.msra.mxu0 0.0
        %276 = vmatprep.subr.mxu0 0.0
        %277 = vmatpush1.msra.mxu0 0.0
        %278 = vmatprep.subr.mxu0 0.0
        %279 = vmatpush1.msra.mxu0 0.0
        %280 = vmatprep.subr.mxu0 0.0
        %281 = vmatpush1.msra.mxu0 0.0
        %282 = vmatprep.subr.mxu0 0.0
        %283 = vmatpush1.msra.mxu0 0.0
        %284 = vmatprep.subr.mxu0 0.0
        %285 = vmatpush1.msra.mxu0 0.0
        %286 = vmatprep.subr.mxu0 0.0
        %287 = vmatpush1.msra.mxu0 0.0
        %288 = vmatprep.subr.mxu0 0.0
        %289 = vmatpush1.msra.mxu0 0.0
        %290 = vmatprep.subr.mxu0 0.0
        %291 = vmatpush1.msra.mxu0 0.0
        %292 = vmatprep.subr.mxu0 0.0
        %293 = vmatpush1.msra.mxu0 0.0
        %294 = vmatprep.subr.mxu0 0.0
        %295 = vmatpush1.msra.mxu0 0.0
        %296 = vmatprep.subr.mxu0 0.0
        %297 = vmatpush1.msra.mxu0 0.0
        %298 = vmatprep.subr.mxu0 0.0
        %299 = vmatpush1.msra.mxu0 0.0
        %300 = vmatprep.subr.mxu0 0.0
        %301 = vmatpush1.msra.mxu0 0.0
        %302 = vmatprep.subr.mxu0 0.0
        %303 = vmatpush1.msra.mxu0 0.0
        %304 = vmatprep.mubr.f32.mxu0 0.0
        %305 = vmatmul.mubr.f32.gmra.mrb[0].mxu0 %v225
        %v306 = vpop.f32.mrb[0].mxu0
        %v307 = vadd.f32 %v206, %v306
        %v308 = vpop.f32.mrb[0].mxu0
        %309 = vmatprep.mubr.f32.mxu0 0.0
        %310 = vmatmul.mubr.f32.gmra.mrb[0].mxu0 %v228
        %v311 = vpop.f32.mrb[0].mxu0
        %v312 = vadd.f32 %v211, %v311
        %v313 = vpop.f32.mrb[0].mxu0
        %314 = vmatprep.mubr.f32.mxu0 0.0
        %315 = vmatmul.mubr.f32.gmra.mrb[0].mxu0 %v231
        %v316 = vpop.f32.mrb[0].mxu0
        %v317 = vadd.f32 %v216, %v316
        %v318 = vpop.f32.mrb[0].mxu0
        %319 = vmatprep.mubr.f32.mxu0 0.0
        %320 = vmatmul.mubr.f32.gmra.mrb[0].mxu0 %v234
        %v321 = vpop.f32.mrb[0].mxu0
        %v322 = vadd.f32 %v221, %v321
        %v323 = vpop.f32.mrb[0].mxu0
        %324 = vdwg.mxu0
        %325 = vst [vmem:[%s185] sm:$0xff] %v307
        %326 = vst [vmem:[%s185 + $0x8] sm:$0xff] %v312
        %327 = vst [vmem:[%s185 + $0x10] sm:$0xff] %v317
        %328 = vst [vmem:[%s185 + $0x18] sm:$0xff] %v322
        %s329 = sand.u32 %s109, 1
        %s330 = scalar_lea.sflag [#allocation3], %s329
        %s331 = sand.u32 %s109, 1
        %s332 = smul.addr %s331, 32
        %s333 = scalar_lea.vmem [#allocation2], %s332
        // Predicated region
        $region33: #{tpu_custom_call.1} parent=31 // pred_check
          %p334 = pneg %p119
        $region34: #{tpu_custom_call.1} parent=31 // pred_check_branch
          %336 = sbr.rel (%p334) target = $region36
        $region35: #{tpu_custom_call.1} parent=31 // pred_region
          %s338 = ssub.s32 512, 512
          %339 = vsyncadd %s330, %s338
          %s340 = smul.addr %s21, 8
          %s341 = sadd.s32 %s22, %s340
          %s342 = smul.addr %s341, 128
          %s343 = scalar_lea.hbm %s3, %s342
          %s344 = sshll.u32 %s333, 4
          %s345 = int_to_ptr.vmem [resolvable:$true] %s344
          %350 = dma.vmem_to_hbm [thread:$0]  %s345, 512, %s343, %s330, 128, 256, 8
        $region36: #{tpu_custom_call.1} parent=31 // pred_fallthru
          _
      $region32: #{tpu_custom_call.1} parent=5 // pred_fallthru
        _
      %p351 = scmp.le.s32.totalorder 2, %s12
      // Predicated region
      $region37: #{tpu_custom_call.1} parent=5 // pred_check
        %p352 = pneg %p351
      $region38: #{tpu_custom_call.1} parent=5 // pred_check_branch
        %354 = sbr.rel (%p352) target = $region40
      $region39: #{tpu_custom_call.1} parent=5 // pred_region
        %s355 = ssub.s32 %s12, 2
        // Predicated region
        $region41: #{tpu_custom_call.1} parent=39 // pred_check
          %p356 = pneg %p125
        $region42: #{tpu_custom_call.1} parent=39 // pred_check_branch
          %358 = sbr.rel (%p356) target = $region44
        $region43: #{tpu_custom_call.1} parent=39 // pred_region
          %s359 = sand.u32 %s110, 1
          %s360 = scalar_lea.sflag [#allocation3], %s359
          %s361 = sand.u32 %s110, 1
          %s362 = smul.addr %s361, 32
          %s363 = scalar_lea.vmem [#allocation2], %s362
          %364 = dma.done %s360, 512
        $region44: #{tpu_custom_call.1} parent=39 // pred_fallthru
          _
      $region40: #{tpu_custom_call.1} parent=5 // pred_fallthru
        _
    $region6: #{tpu_custom_call.1} parent=1 // loop_footer
      %s16 = sadd.s32 1, %s12
    $region7: #{tpu_custom_call.1} parent=1 // loop_footer_branch
      %11 = sbr.rel target = $region3
    $region8: #{tpu_custom_call.1} parent=1 // loop_exit
      _
    %365 = vsyncpa [#allocation3], 1
    %s366 = scalar_lea.sflag [#allocation3], 1
    %367 = vsyncpa %s366, 1

</llo_original>
